<compile_context>
chip_gen: v6e
topology: v6e:2x2x1
jax: 0.10.0
libtpu: 0.0.40
codegen_flags: <defaults>
</compile_context>

<pallas_src>
import jax
import jax.numpy as jnp
from jax.experimental import pallas as pl
from jax.experimental.pallas import tpu as pltpu


def _frelu_kernel(x_ref, w_ref, b_ref, o_ref):
    # x_ref / o_ref: (c_blk, H, W) NCHW block  (W -> lanes, H -> sublanes).
    # w_ref: SMEM (C*9,) f32 -- depthwise 3x3 weights with BN scale folded in.
    # b_ref: SMEM (C,)   f32 -- folded BN bias.
    c_blk, H, W = o_ref.shape
    c0 = pl.program_id(1) * c_blk

    # Border masks implementing the implicit zero padding (loop-invariant, hoisted).
    row = jax.lax.broadcasted_iota(jnp.int32, (H, W), 0)
    col = jax.lax.broadcasted_iota(jnp.int32, (H, W), 1)
    has_left = col > 0
    has_right = col < (W - 1)
    has_up = row > 0
    has_down = row < (H - 1)

    for ci in range(c_blk):  # c_blk <= 8: short, fully unrolled
        c = c0 + ci
        wt = lambda k: w_ref[c * 9 + k]          # per-channel SMEM scalar weight
        x = x_ref[ci].astype(jnp.float32)        # (H, W)

        # Horizontal neighbour taps: lane rolls (XLU) + wrapped-column masking.
        x_l = jnp.where(has_left, pltpu.roll(x, 1, axis=1), 0.0)       # x[h, w-1]
        x_r = jnp.where(has_right, pltpu.roll(x, W - 1, axis=1), 0.0)  # x[h, w+1]

        # Horizontal combination for each kernel row.
        top = x_l * wt(0) + x * wt(1) + x_r * wt(2)   # needs rows h-1
        mid = x_l * wt(3) + x * wt(4) + x_r * wt(5)   # rows h
        bot = x_l * wt(6) + x * wt(7) + x_r * wt(8)   # needs rows h+1

        # Vertical shifts: sublane rolls + wrapped-row masking; acc starts at the bias.
        conv = (b_ref[c] + mid
                + jnp.where(has_up, pltpu.roll(top, 1, axis=0), 0.0)
                + jnp.where(has_down, pltpu.roll(bot, H - 1, axis=0), 0.0))

        # Centre tap (x) is reused directly for the elementwise max.
        o_ref[ci] = jnp.maximum(x, conv).astype(o_ref.dtype)


def frelu(x, conv_w, bn_gamma, bn_beta, bn_mean, bn_var, *, eps=1e-5):
    """FReLU forward: max(x, BN(depthwise_conv3x3(x))). `x` is NCHW."""
    N, C, H, W = x.shape
    assert conv_w.shape == (C, 1, 3, 3)

    # Fold inference-mode BatchNorm into the depthwise conv (tiny, wrapper-side).
    scale = bn_gamma.astype(jnp.float32) / jnp.sqrt(bn_var.astype(jnp.float32) + eps)
    b_fused = (bn_beta.astype(jnp.float32) - bn_mean.astype(jnp.float32) * scale)  # (C,)
    w_fused = (conv_w.reshape(C, 9).astype(jnp.float32) * scale[:, None]).reshape(-1)  # (C*9,)

    # Channel block: largest divisor of C (capped at 8) whose planes fit a VMEM budget.
    plane_bytes = H * W * 4
    c_blk = 1
    for d in range(min(C, 8), 0, -1):
        if C % d == 0 and d * plane_bytes <= 4 * 1024 * 1024:
            c_blk = d
            break
    # Ensure >= 2 grid steps when possible so both v7x TensorCores get work.
    if N * (C // c_blk) < 2 and c_blk > 1:
        for d in range(c_blk - 1, 0, -1):
            if C % d == 0:
                c_blk = d
                break

    grid = (N, C // c_blk)
    itemsize = jnp.dtype(x.dtype).itemsize
    cost = pl.CostEstimate(
        flops=20 * N * C * H * W,                       # 9 MACs + bias + max per element
        transcendentals=0,
        bytes_accessed=2 * N * C * H * W * itemsize + (w_fused.size + b_fused.size) * 4,
    )

    return pl.pallas_call(
        _frelu_kernel,
        out_shape=jax.ShapeDtypeStruct((N, C, H, W), x.dtype),
        grid=grid,
        in_specs=[
            pl.BlockSpec((None, c_blk, H, W), lambda n, c: (n, c, 0, 0)),
            pl.BlockSpec(memory_space=pltpu.MemorySpace.SMEM),   # folded weights (C*9,)
            pl.BlockSpec(memory_space=pltpu.MemorySpace.SMEM),   # folded bias    (C,)
        ],
        out_specs=pl.BlockSpec((None, c_blk, H, W), lambda n, c: (n, c, 0, 0)),
        compiler_params=pltpu.CompilerParams(
            dimension_semantics=("parallel", "parallel"),
            vmem_limit_bytes=32 * 1024 * 1024,
        ),
        cost_estimate=cost,
    )(x, w_fused, b_fused)


if __name__ == "__main__":
    key = jax.random.PRNGKey(0)
    k_x, k_w, k_g, k_b, k_m, k_v = jax.random.split(key, 6)

    N, C, H, W = 2, 4, 16, 16
    eps = 1e-5
    x = jax.random.normal(k_x, (N, C, H, W), dtype=jnp.float32)
    conv_w = jax.random.normal(k_w, (C, 1, 3, 3), dtype=jnp.float32) * 0.2
    gamma = jax.random.uniform(k_g, (C,), minval=0.5, maxval=1.5, dtype=jnp.float32)
    beta = jax.random.normal(k_b, (C,), dtype=jnp.float32) * 0.1
    mean = jax.random.normal(k_m, (C,), dtype=jnp.float32) * 0.1
    var = jax.random.uniform(k_v, (C,), minval=0.5, maxval=1.5, dtype=jnp.float32)

    y = jax.block_until_ready(frelu(x, conv_w, gamma, beta, mean, var, eps=eps))

    # Plain-JAX reference: depthwise conv + inference BN + max.
    conv = jax.lax.conv_general_dilated(
        x, conv_w, window_strides=(1, 1), padding=((1, 1), (1, 1)),
        dimension_numbers=("NCHW", "OIHW", "NCHW"), feature_group_count=C)
    bn = (conv - mean[None, :, None, None]) * (
        gamma[None, :, None, None] / jnp.sqrt(var[None, :, None, None] + eps)
    ) + beta[None, :, None, None]
    y_ref = jnp.maximum(x, bn)

    assert y.shape == x.shape and y.dtype == x.dtype
    assert jnp.allclose(y, y_ref, atol=1e-4, rtol=1e-4), float(jnp.max(jnp.abs(y - y_ref)))

    print("KERNEL_OK")
</pallas_src>

<mosaic_0001>
module attributes {stable_mosaic.version = 11 : i64} {
  func.func @_frelu_kernel(%arg0: i32, %arg1: i32, %arg2: memref<1x4x16x16xf32, #tpu.memory_space<vmem>>, %arg3: memref<36xf32, #tpu.memory_space<smem>>, %arg4: memref<4xf32, #tpu.memory_space<smem>>, %arg5: memref<1x4x16x16xf32, #tpu.memory_space<vmem>>) attributes {dimension_semantics = [#tpu.dimension_semantics<parallel>, #tpu.dimension_semantics<parallel>], iteration_bounds = array<i64: 2, 1>, scalar_prefetch = 0 : i64, scratch_operands = 0 : i64, tpu.core_type = #tpu.core_type<tc>, window_params = [{transform_indices = @transform_0, window_bounds = array<i64: 1, 4, 16, 16>}, {transform_indices = @transform_1, window_bounds = array<i64: 36>}, {transform_indices = @transform_2, window_bounds = array<i64: 4>}, {transform_indices = @transform_3, window_bounds = array<i64: 1, 4, 16, 16>}]} {
    %c4_i32 = arith.constant 4 : i32
    %0 = arith.muli %arg1, %c4_i32 : i32
    %1 = tpu.iota {dimensions = array<i32: 0>} : vector<16x16xi32>
    %2 = tpu.iota {dimensions = array<i32: 1>} : vector<16x16xi32>
    %c0_i32 = arith.constant 0 : i32
    %3 = vector.broadcast %c0_i32 : i32 to vector<16x16xi32>
    %4 = arith.cmpi sgt, %2, %3 : vector<16x16xi32>
    %c15_i32 = arith.constant 15 : i32
    %5 = vector.broadcast %c15_i32 : i32 to vector<16x16xi32>
    %6 = arith.cmpi slt, %2, %5 : vector<16x16xi32>
    %c0_i32_0 = arith.constant 0 : i32
    %7 = vector.broadcast %c0_i32_0 : i32 to vector<16x16xi32>
    %8 = arith.cmpi sgt, %1, %7 : vector<16x16xi32>
    %c15_i32_1 = arith.constant 15 : i32
    %9 = vector.broadcast %c15_i32_1 : i32 to vector<16x16xi32>
    %10 = arith.cmpi slt, %1, %9 : vector<16x16xi32>
    %c0_i32_2 = arith.constant 0 : i32
    %11 = arith.addi %0, %c0_i32_2 : i32
    %c0 = arith.constant 0 : index
    %c0_3 = arith.constant 0 : index
    %c0_4 = arith.constant 0 : index
    %c0_5 = arith.constant 0 : index
    %12 = vector.load %arg2[%c0, %c0_3, %c0_4, %c0_5] : memref<1x4x16x16xf32, #tpu.memory_space<vmem>>, vector<1x1x16x16xf32>
    %13 = vector.shape_cast %12 : vector<1x1x16x16xf32> to vector<16x16xf32>
    %c1_i32 = arith.constant 1 : i32
    %14 = tpu.dynamic_rotate %13 by %c1_i32 dim 1 : vector<16x16xf32>, i32 -> vector<16x16xf32>
    %cst = arith.constant 0.000000e+00 : f32
    %15 = vector.broadcast %cst : f32 to vector<16x16xf32>
    %16 = arith.select %4, %14, %15 : vector<16x16xi1>, vector<16x16xf32>
    %c15_i32_6 = arith.constant 15 : i32
    %17 = tpu.dynamic_rotate %13 by %c15_i32_6 dim 1 : vector<16x16xf32>, i32 -> vector<16x16xf32>
    %cst_7 = arith.constant 0.000000e+00 : f32
    %18 = vector.broadcast %cst_7 : f32 to vector<16x16xf32>
    %19 = arith.select %6, %17, %18 : vector<16x16xi1>, vector<16x16xf32>
    %c9_i32 = arith.constant 9 : i32
    %20 = arith.muli %11, %c9_i32 : i32
    %c0_i32_8 = arith.constant 0 : i32
    %21 = arith.addi %20, %c0_i32_8 : i32
    %22 = arith.index_cast %21 : i32 to index
    %23 = memref.load %arg3[%22] : memref<36xf32, #tpu.memory_space<smem>>
    %24 = vector.broadcast %23 : f32 to vector<16x16xf32>
    %25 = arith.mulf %16, %24 : vector<16x16xf32>
    %c9_i32_9 = arith.constant 9 : i32
    %26 = arith.muli %11, %c9_i32_9 : i32
    %c1_i32_10 = arith.constant 1 : i32
    %27 = arith.addi %26, %c1_i32_10 : i32
    %28 = arith.index_cast %27 : i32 to index
    %29 = memref.load %arg3[%28] : memref<36xf32, #tpu.memory_space<smem>>
    %30 = vector.broadcast %29 : f32 to vector<16x16xf32>
    %31 = arith.mulf %13, %30 : vector<16x16xf32>
    %32 = arith.addf %25, %31 : vector<16x16xf32>
    %c9_i32_11 = arith.constant 9 : i32
    %33 = arith.muli %11, %c9_i32_11 : i32
    %c2_i32 = arith.constant 2 : i32
    %34 = arith.addi %33, %c2_i32 : i32
    %35 = arith.index_cast %34 : i32 to index
    %36 = memref.load %arg3[%35] : memref<36xf32, #tpu.memory_space<smem>>
    %37 = vector.broadcast %36 : f32 to vector<16x16xf32>
    %38 = arith.mulf %19, %37 : vector<16x16xf32>
    %39 = arith.addf %32, %38 : vector<16x16xf32>
    %c9_i32_12 = arith.constant 9 : i32
    %40 = arith.muli %11, %c9_i32_12 : i32
    %c3_i32 = arith.constant 3 : i32
    %41 = arith.addi %40, %c3_i32 : i32
    %42 = arith.index_cast %41 : i32 to index
    %43 = memref.load %arg3[%42] : memref<36xf32, #tpu.memory_space<smem>>
    %44 = vector.broadcast %43 : f32 to vector<16x16xf32>
    %45 = arith.mulf %16, %44 : vector<16x16xf32>
    %c9_i32_13 = arith.constant 9 : i32
    %46 = arith.muli %11, %c9_i32_13 : i32
    %c4_i32_14 = arith.constant 4 : i32
    %47 = arith.addi %46, %c4_i32_14 : i32
    %48 = arith.index_cast %47 : i32 to index
    %49 = memref.load %arg3[%48] : memref<36xf32, #tpu.memory_space<smem>>
    %50 = vector.broadcast %49 : f32 to vector<16x16xf32>
    %51 = arith.mulf %13, %50 : vector<16x16xf32>
    %52 = arith.addf %45, %51 : vector<16x16xf32>
    %c9_i32_15 = arith.constant 9 : i32
    %53 = arith.muli %11, %c9_i32_15 : i32
    %c5_i32 = arith.constant 5 : i32
    %54 = arith.addi %53, %c5_i32 : i32
    %55 = arith.index_cast %54 : i32 to index
    %56 = memref.load %arg3[%55] : memref<36xf32, #tpu.memory_space<smem>>
    %57 = vector.broadcast %56 : f32 to vector<16x16xf32>
    %58 = arith.mulf %19, %57 : vector<16x16xf32>
    %59 = arith.addf %52, %58 : vector<16x16xf32>
    %c9_i32_16 = arith.constant 9 : i32
    %60 = arith.muli %11, %c9_i32_16 : i32
    %c6_i32 = arith.constant 6 : i32
    %61 = arith.addi %60, %c6_i32 : i32
    %62 = arith.index_cast %61 : i32 to index
    %63 = memref.load %arg3[%62] : memref<36xf32, #tpu.memory_space<smem>>
    %64 = vector.broadcast %63 : f32 to vector<16x16xf32>
    %65 = arith.mulf %16, %64 : vector<16x16xf32>
    %c9_i32_17 = arith.constant 9 : i32
    %66 = arith.muli %11, %c9_i32_17 : i32
    %c7_i32 = arith.constant 7 : i32
    %67 = arith.addi %66, %c7_i32 : i32
    %68 = arith.index_cast %67 : i32 to index
    %69 = memref.load %arg3[%68] : memref<36xf32, #tpu.memory_space<smem>>
    %70 = vector.broadcast %69 : f32 to vector<16x16xf32>
    %71 = arith.mulf %13, %70 : vector<16x16xf32>
    %72 = arith.addf %65, %71 : vector<16x16xf32>
    %c9_i32_18 = arith.constant 9 : i32
    %73 = arith.muli %11, %c9_i32_18 : i32
    %c8_i32 = arith.constant 8 : i32
    %74 = arith.addi %73, %c8_i32 : i32
    %75 = arith.index_cast %74 : i32 to index
    %76 = memref.load %arg3[%75] : memref<36xf32, #tpu.memory_space<smem>>
    %77 = vector.broadcast %76 : f32 to vector<16x16xf32>
    %78 = arith.mulf %19, %77 : vector<16x16xf32>
    %79 = arith.addf %72, %78 : vector<16x16xf32>
    %80 = arith.index_cast %11 : i32 to index
    %81 = memref.load %arg4[%80] : memref<4xf32, #tpu.memory_space<smem>>
    %82 = vector.broadcast %81 : f32 to vector<16x16xf32>
    %83 = arith.addf %82, %59 : vector<16x16xf32>
    %c1_i32_19 = arith.constant 1 : i32
    %84 = tpu.dynamic_rotate %39 by %c1_i32_19 dim 0 : vector<16x16xf32>, i32 -> vector<16x16xf32>
    %cst_20 = arith.constant 0.000000e+00 : f32
    %85 = vector.broadcast %cst_20 : f32 to vector<16x16xf32>
    %86 = arith.select %8, %84, %85 : vector<16x16xi1>, vector<16x16xf32>
    %87 = arith.addf %83, %86 : vector<16x16xf32>
    %c15_i32_21 = arith.constant 15 : i32
    %88 = tpu.dynamic_rotate %79 by %c15_i32_21 dim 0 : vector<16x16xf32>, i32 -> vector<16x16xf32>
    %cst_22 = arith.constant 0.000000e+00 : f32
    %89 = vector.broadcast %cst_22 : f32 to vector<16x16xf32>
    %90 = arith.select %10, %88, %89 : vector<16x16xi1>, vector<16x16xf32>
    %91 = arith.addf %87, %90 : vector<16x16xf32>
    %92 = arith.maximumf %13, %91 : vector<16x16xf32>
    %c0_23 = arith.constant 0 : index
    %c0_24 = arith.constant 0 : index
    %c0_25 = arith.constant 0 : index
    %c0_26 = arith.constant 0 : index
    %93 = vector.load %arg5[%c0_23, %c0_24, %c0_25, %c0_26] : memref<1x4x16x16xf32, #tpu.memory_space<vmem>>, vector<1x1x16x16xf32>
    %94 = vector.shape_cast %93 : vector<1x1x16x16xf32> to vector<16x16xf32>
    %95 = vector.shape_cast %92 : vector<16x16xf32> to vector<1x1x16x16xf32>
    tpu.vector_store %arg5[%c0_23, %c0_24, %c0_25, %c0_26], %95 {strides = array<i32>} : memref<1x4x16x16xf32, #tpu.memory_space<vmem>>, vector<1x1x16x16xf32>,
    %c1_i32_27 = arith.constant 1 : i32
    %96 = arith.addi %0, %c1_i32_27 : i32
    %c0_28 = arith.constant 0 : index
    %c1 = arith.constant 1 : index
    %c0_29 = arith.constant 0 : index
    %c0_30 = arith.constant 0 : index
    %97 = vector.load %arg2[%c0_28, %c1, %c0_29, %c0_30] : memref<1x4x16x16xf32, #tpu.memory_space<vmem>>, vector<1x1x16x16xf32>
    %98 = vector.shape_cast %97 : vector<1x1x16x16xf32> to vector<16x16xf32>
    %c1_i32_31 = arith.constant 1 : i32
    %99 = tpu.dynamic_rotate %98 by %c1_i32_31 dim 1 : vector<16x16xf32>, i32 -> vector<16x16xf32>
    %cst_32 = arith.constant 0.000000e+00 : f32
    %100 = vector.broadcast %cst_32 : f32 to vector<16x16xf32>
    %101 = arith.select %4, %99, %100 : vector<16x16xi1>, vector<16x16xf32>
    %c15_i32_33 = arith.constant 15 : i32
    %102 = tpu.dynamic_rotate %98 by %c15_i32_33 dim 1 : vector<16x16xf32>, i32 -> vector<16x16xf32>
    %cst_34 = arith.constant 0.000000e+00 : f32
    %103 = vector.broadcast %cst_34 : f32 to vector<16x16xf32>
    %104 = arith.select %6, %102, %103 : vector<16x16xi1>, vector<16x16xf32>
    %c9_i32_35 = arith.constant 9 : i32
    %105 = arith.muli %96, %c9_i32_35 : i32
    %c0_i32_36 = arith.constant 0 : i32
    %106 = arith.addi %105, %c0_i32_36 : i32
    %107 = arith.index_cast %106 : i32 to index
    %108 = memref.load %arg3[%107] : memref<36xf32, #tpu.memory_space<smem>>
    %109 = vector.broadcast %108 : f32 to vector<16x16xf32>
    %110 = arith.mulf %101, %109 : vector<16x16xf32>
    %c9_i32_37 = arith.constant 9 : i32
    %111 = arith.muli %96, %c9_i32_37 : i32
    %c1_i32_38 = arith.constant 1 : i32
    %112 = arith.addi %111, %c1_i32_38 : i32
    %113 = arith.index_cast %112 : i32 to index
    %114 = memref.load %arg3[%113] : memref<36xf32, #tpu.memory_space<smem>>
    %115 = vector.broadcast %114 : f32 to vector<16x16xf32>
    %116 = arith.mulf %98, %115 : vector<16x16xf32>
    %117 = arith.addf %110, %116 : vector<16x16xf32>
    %c9_i32_39 = arith.constant 9 : i32
    %118 = arith.muli %96, %c9_i32_39 : i32
    %c2_i32_40 = arith.constant 2 : i32
    %119 = arith.addi %118, %c2_i32_40 : i32
    %120 = arith.index_cast %119 : i32 to index
    %121 = memref.load %arg3[%120] : memref<36xf32, #tpu.memory_space<smem>>
    %122 = vector.broadcast %121 : f32 to vector<16x16xf32>
    %123 = arith.mulf %104, %122 : vector<16x16xf32>
    %124 = arith.addf %117, %123 : vector<16x16xf32>
    %c9_i32_41 = arith.constant 9 : i32
    %125 = arith.muli %96, %c9_i32_41 : i32
    %c3_i32_42 = arith.constant 3 : i32
    %126 = arith.addi %125, %c3_i32_42 : i32
    %127 = arith.index_cast %126 : i32 to index
    %128 = memref.load %arg3[%127] : memref<36xf32, #tpu.memory_space<smem>>
    %129 = vector.broadcast %128 : f32 to vector<16x16xf32>
    %130 = arith.mulf %101, %129 : vector<16x16xf32>
    %c9_i32_43 = arith.constant 9 : i32
    %131 = arith.muli %96, %c9_i32_43 : i32
    %c4_i32_44 = arith.constant 4 : i32
    %132 = arith.addi %131, %c4_i32_44 : i32
    %133 = arith.index_cast %132 : i32 to index
    %134 = memref.load %arg3[%133] : memref<36xf32, #tpu.memory_space<smem>>
    %135 = vector.broadcast %134 : f32 to vector<16x16xf32>
    %136 = arith.mulf %98, %135 : vector<16x16xf32>
    %137 = arith.addf %130, %136 : vector<16x16xf32>
    %c9_i32_45 = arith.constant 9 : i32
    %138 = arith.muli %96, %c9_i32_45 : i32
    %c5_i32_46 = arith.constant 5 : i32
    %139 = arith.addi %138, %c5_i32_46 : i32
    %140 = arith.index_cast %139 : i32 to index
    %141 = memref.load %arg3[%140] : memref<36xf32, #tpu.memory_space<smem>>
    %142 = vector.broadcast %141 : f32 to vector<16x16xf32>
    %143 = arith.mulf %104, %142 : vector<16x16xf32>
    %144 = arith.addf %137, %143 : vector<16x16xf32>
    %c9_i32_47 = arith.constant 9 : i32
    %145 = arith.muli %96, %c9_i32_47 : i32
    %c6_i32_48 = arith.constant 6 : i32
    %146 = arith.addi %145, %c6_i32_48 : i32
    %147 = arith.index_cast %146 : i32 to index
    %148 = memref.load %arg3[%147] : memref<36xf32, #tpu.memory_space<smem>>
    %149 = vector.broadcast %148 : f32 to vector<16x16xf32>
    %150 = arith.mulf %101, %149 : vector<16x16xf32>
    %c9_i32_49 = arith.constant 9 : i32
    %151 = arith.muli %96, %c9_i32_49 : i32
    %c7_i32_50 = arith.constant 7 : i32
    %152 = arith.addi %151, %c7_i32_50 : i32
    %153 = arith.index_cast %152 : i32 to index
    %154 = memref.load %arg3[%153] : memref<36xf32, #tpu.memory_space<smem>>
    %155 = vector.broadcast %154 : f32 to vector<16x16xf32>
    %156 = arith.mulf %98, %155 : vector<16x16xf32>
    %157 = arith.addf %150, %156 : vector<16x16xf32>
    %c9_i32_51 = arith.constant 9 : i32
    %158 = arith.muli %96, %c9_i32_51 : i32
    %c8_i32_52 = arith.constant 8 : i32
    %159 = arith.addi %158, %c8_i32_52 : i32
    %160 = arith.index_cast %159 : i32 to index
    %161 = memref.load %arg3[%160] : memref<36xf32, #tpu.memory_space<smem>>
    %162 = vector.broadcast %161 : f32 to vector<16x16xf32>
    %163 = arith.mulf %104, %162 : vector<16x16xf32>
    %164 = arith.addf %157, %163 : vector<16x16xf32>
    %165 = arith.index_cast %96 : i32 to index
    %166 = memref.load %arg4[%165] : memref<4xf32, #tpu.memory_space<smem>>
    %167 = vector.broadcast %166 : f32 to vector<16x16xf32>
    %168 = arith.addf %167, %144 : vector<16x16xf32>
    %c1_i32_53 = arith.constant 1 : i32
    %169 = tpu.dynamic_rotate %124 by %c1_i32_53 dim 0 : vector<16x16xf32>, i32 -> vector<16x16xf32>
    %cst_54 = arith.constant 0.000000e+00 : f32
    %170 = vector.broadcast %cst_54 : f32 to vector<16x16xf32>
    %171 = arith.select %8, %169, %170 : vector<16x16xi1>, vector<16x16xf32>
    %172 = arith.addf %168, %171 : vector<16x16xf32>
    %c15_i32_55 = arith.constant 15 : i32
    %173 = tpu.dynamic_rotate %164 by %c15_i32_55 dim 0 : vector<16x16xf32>, i32 -> vector<16x16xf32>
    %cst_56 = arith.constant 0.000000e+00 : f32
    %174 = vector.broadcast %cst_56 : f32 to vector<16x16xf32>
    %175 = arith.select %10, %173, %174 : vector<16x16xi1>, vector<16x16xf32>
    %176 = arith.addf %172, %175 : vector<16x16xf32>
    %177 = arith.maximumf %98, %176 : vector<16x16xf32>
    %c0_57 = arith.constant 0 : index
    %c1_58 = arith.constant 1 : index
    %c0_59 = arith.constant 0 : index
    %c0_60 = arith.constant 0 : index
    %178 = vector.load %arg5[%c0_57, %c1_58, %c0_59, %c0_60] : memref<1x4x16x16xf32, #tpu.memory_space<vmem>>, vector<1x1x16x16xf32>
    %179 = vector.shape_cast %178 : vector<1x1x16x16xf32> to vector<16x16xf32>
    %180 = vector.shape_cast %177 : vector<16x16xf32> to vector<1x1x16x16xf32>
    tpu.vector_store %arg5[%c0_57, %c1_58, %c0_59, %c0_60], %180 {strides = array<i32>} : memref<1x4x16x16xf32, #tpu.memory_space<vmem>>, vector<1x1x16x16xf32>,
    %c2_i32_61 = arith.constant 2 : i32
    %181 = arith.addi %0, %c2_i32_61 : i32
    %c0_62 = arith.constant 0 : index
    %c2 = arith.constant 2 : index
    %c0_63 = arith.constant 0 : index
    %c0_64 = arith.constant 0 : index
    %182 = vector.load %arg2[%c0_62, %c2, %c0_63, %c0_64] : memref<1x4x16x16xf32, #tpu.memory_space<vmem>>, vector<1x1x16x16xf32>
    %183 = vector.shape_cast %182 : vector<1x1x16x16xf32> to vector<16x16xf32>
    %c1_i32_65 = arith.constant 1 : i32
    %184 = tpu.dynamic_rotate %183 by %c1_i32_65 dim 1 : vector<16x16xf32>, i32 -> vector<16x16xf32>
    %cst_66 = arith.constant 0.000000e+00 : f32
    %185 = vector.broadcast %cst_66 : f32 to vector<16x16xf32>
    %186 = arith.select %4, %184, %185 : vector<16x16xi1>, vector<16x16xf32>
    %c15_i32_67 = arith.constant 15 : i32
    %187 = tpu.dynamic_rotate %183 by %c15_i32_67 dim 1 : vector<16x16xf32>, i32 -> vector<16x16xf32>
    %cst_68 = arith.constant 0.000000e+00 : f32
    %188 = vector.broadcast %cst_68 : f32 to vector<16x16xf32>
    %189 = arith.select %6, %187, %188 : vector<16x16xi1>, vector<16x16xf32>
    %c9_i32_69 = arith.constant 9 : i32
    %190 = arith.muli %181, %c9_i32_69 : i32
    %c0_i32_70 = arith.constant 0 : i32
    %191 = arith.addi %190, %c0_i32_70 : i32
    %192 = arith.index_cast %191 : i32 to index
    %193 = memref.load %arg3[%192] : memref<36xf32, #tpu.memory_space<smem>>
    %194 = vector.broadcast %193 : f32 to vector<16x16xf32>
    %195 = arith.mulf %186, %194 : vector<16x16xf32>
    %c9_i32_71 = arith.constant 9 : i32
    %196 = arith.muli %181, %c9_i32_71 : i32
    %c1_i32_72 = arith.constant 1 : i32
    %197 = arith.addi %196, %c1_i32_72 : i32
    %198 = arith.index_cast %197 : i32 to index
    %199 = memref.load %arg3[%198] : memref<36xf32, #tpu.memory_space<smem>>
    %200 = vector.broadcast %199 : f32 to vector<16x16xf32>
    %201 = arith.mulf %183, %200 : vector<16x16xf32>
    %202 = arith.addf %195, %201 : vector<16x16xf32>
    %c9_i32_73 = arith.constant 9 : i32
    %203 = arith.muli %181, %c9_i32_73 : i32
    %c2_i32_74 = arith.constant 2 : i32
    %204 = arith.addi %203, %c2_i32_74 : i32
    %205 = arith.index_cast %204 : i32 to index
    %206 = memref.load %arg3[%205] : memref<36xf32, #tpu.memory_space<smem>>
    %207 = vector.broadcast %206 : f32 to vector<16x16xf32>
    %208 = arith.mulf %189, %207 : vector<16x16xf32>
    %209 = arith.addf %202, %208 : vector<16x16xf32>
    %c9_i32_75 = arith.constant 9 : i32
    %210 = arith.muli %181, %c9_i32_75 : i32
    %c3_i32_76 = arith.constant 3 : i32
    %211 = arith.addi %210, %c3_i32_76 : i32
    %212 = arith.index_cast %211 : i32 to index
    %213 = memref.load %arg3[%212] : memref<36xf32, #tpu.memory_space<smem>>
    %214 = vector.broadcast %213 : f32 to vector<16x16xf32>
    %215 = arith.mulf %186, %214 : vector<16x16xf32>
    %c9_i32_77 = arith.constant 9 : i32
    %216 = arith.muli %181, %c9_i32_77 : i32
    %c4_i32_78 = arith.constant 4 : i32
    %217 = arith.addi %216, %c4_i32_78 : i32
    %218 = arith.index_cast %217 : i32 to index
    %219 = memref.load %arg3[%218] : memref<36xf32, #tpu.memory_space<smem>>
    %220 = vector.broadcast %219 : f32 to vector<16x16xf32>
    %221 = arith.mulf %183, %220 : vector<16x16xf32>
    %222 = arith.addf %215, %221 : vector<16x16xf32>
    %c9_i32_79 = arith.constant 9 : i32
    %223 = arith.muli %181, %c9_i32_79 : i32
    %c5_i32_80 = arith.constant 5 : i32
    %224 = arith.addi %223, %c5_i32_80 : i32
    %225 = arith.index_cast %224 : i32 to index
    %226 = memref.load %arg3[%225] : memref<36xf32, #tpu.memory_space<smem>>
    %227 = vector.broadcast %226 : f32 to vector<16x16xf32>
    %228 = arith.mulf %189, %227 : vector<16x16xf32>
    %229 = arith.addf %222, %228 : vector<16x16xf32>
    %c9_i32_81 = arith.constant 9 : i32
    %230 = arith.muli %181, %c9_i32_81 : i32
    %c6_i32_82 = arith.constant 6 : i32
    %231 = arith.addi %230, %c6_i32_82 : i32
    %232 = arith.index_cast %231 : i32 to index
    %233 = memref.load %arg3[%232] : memref<36xf32, #tpu.memory_space<smem>>
    %234 = vector.broadcast %233 : f32 to vector<16x16xf32>
    %235 = arith.mulf %186, %234 : vector<16x16xf32>
    %c9_i32_83 = arith.constant 9 : i32
    %236 = arith.muli %181, %c9_i32_83 : i32
    %c7_i32_84 = arith.constant 7 : i32
    %237 = arith.addi %236, %c7_i32_84 : i32
    %238 = arith.index_cast %237 : i32 to index
    %239 = memref.load %arg3[%238] : memref<36xf32, #tpu.memory_space<smem>>
    %240 = vector.broadcast %239 : f32 to vector<16x16xf32>
    %241 = arith.mulf %183, %240 : vector<16x16xf32>
    %242 = arith.addf %235, %241 : vector<16x16xf32>
    %c9_i32_85 = arith.constant 9 : i32
    %243 = arith.muli %181, %c9_i32_85 : i32
    %c8_i32_86 = arith.constant 8 : i32
    %244 = arith.addi %243, %c8_i32_86 : i32
    %245 = arith.index_cast %244 : i32 to index
    %246 = memref.load %arg3[%245] : memref<36xf32, #tpu.memory_space<smem>>
    %247 = vector.broadcast %246 : f32 to vector<16x16xf32>
    %248 = arith.mulf %189, %247 : vector<16x16xf32>
    %249 = arith.addf %242, %248 : vector<16x16xf32>
    %250 = arith.index_cast %181 : i32 to index
    %251 = memref.load %arg4[%250] : memref<4xf32, #tpu.memory_space<smem>>
    %252 = vector.broadcast %251 : f32 to vector<16x16xf32>
    %253 = arith.addf %252, %229 : vector<16x16xf32>
    %c1_i32_87 = arith.constant 1 : i32
    %254 = tpu.dynamic_rotate %209 by %c1_i32_87 dim 0 : vector<16x16xf32>, i32 -> vector<16x16xf32>
    %cst_88 = arith.constant 0.000000e+00 : f32
    %255 = vector.broadcast %cst_88 : f32 to vector<16x16xf32>
    %256 = arith.select %8, %254, %255 : vector<16x16xi1>, vector<16x16xf32>
    %257 = arith.addf %253, %256 : vector<16x16xf32>
    %c15_i32_89 = arith.constant 15 : i32
    %258 = tpu.dynamic_rotate %249 by %c15_i32_89 dim 0 : vector<16x16xf32>, i32 -> vector<16x16xf32>
    %cst_90 = arith.constant 0.000000e+00 : f32
    %259 = vector.broadcast %cst_90 : f32 to vector<16x16xf32>
    %260 = arith.select %10, %258, %259 : vector<16x16xi1>, vector<16x16xf32>
    %261 = arith.addf %257, %260 : vector<16x16xf32>
    %262 = arith.maximumf %183, %261 : vector<16x16xf32>
    %c0_91 = arith.constant 0 : index
    %c2_92 = arith.constant 2 : index
    %c0_93 = arith.constant 0 : index
    %c0_94 = arith.constant 0 : index
    %263 = vector.load %arg5[%c0_91, %c2_92, %c0_93, %c0_94] : memref<1x4x16x16xf32, #tpu.memory_space<vmem>>, vector<1x1x16x16xf32>
    %264 = vector.shape_cast %263 : vector<1x1x16x16xf32> to vector<16x16xf32>
    %265 = vector.shape_cast %262 : vector<16x16xf32> to vector<1x1x16x16xf32>
    tpu.vector_store %arg5[%c0_91, %c2_92, %c0_93, %c0_94], %265 {strides = array<i32>} : memref<1x4x16x16xf32, #tpu.memory_space<vmem>>, vector<1x1x16x16xf32>,
    %c3_i32_95 = arith.constant 3 : i32
    %266 = arith.addi %0, %c3_i32_95 : i32
    %c0_96 = arith.constant 0 : index
    %c3 = arith.constant 3 : index
    %c0_97 = arith.constant 0 : index
    %c0_98 = arith.constant 0 : index
    %267 = vector.load %arg2[%c0_96, %c3, %c0_97, %c0_98] : memref<1x4x16x16xf32, #tpu.memory_space<vmem>>, vector<1x1x16x16xf32>
    %268 = vector.shape_cast %267 : vector<1x1x16x16xf32> to vector<16x16xf32>
    %c1_i32_99 = arith.constant 1 : i32
    %269 = tpu.dynamic_rotate %268 by %c1_i32_99 dim 1 : vector<16x16xf32>, i32 -> vector<16x16xf32>
    %cst_100 = arith.constant 0.000000e+00 : f32
    %270 = vector.broadcast %cst_100 : f32 to vector<16x16xf32>
    %271 = arith.select %4, %269, %270 : vector<16x16xi1>, vector<16x16xf32>
    %c15_i32_101 = arith.constant 15 : i32
    %272 = tpu.dynamic_rotate %268 by %c15_i32_101 dim 1 : vector<16x16xf32>, i32 -> vector<16x16xf32>
    %cst_102 = arith.constant 0.000000e+00 : f32
    %273 = vector.broadcast %cst_102 : f32 to vector<16x16xf32>
    %274 = arith.select %6, %272, %273 : vector<16x16xi1>, vector<16x16xf32>
    %c9_i32_103 = arith.constant 9 : i32
    %275 = arith.muli %266, %c9_i32_103 : i32
    %c0_i32_104 = arith.constant 0 : i32
    %276 = arith.addi %275, %c0_i32_104 : i32
    %277 = arith.index_cast %276 : i32 to index
    %278 = memref.load %arg3[%277] : memref<36xf32, #tpu.memory_space<smem>>
    %279 = vector.broadcast %278 : f32 to vector<16x16xf32>
    %280 = arith.mulf %271, %279 : vector<16x16xf32>
    %c9_i32_105 = arith.constant 9 : i32
    %281 = arith.muli %266, %c9_i32_105 : i32
    %c1_i32_106 = arith.constant 1 : i32
    %282 = arith.addi %281, %c1_i32_106 : i32
    %283 = arith.index_cast %282 : i32 to index
    %284 = memref.load %arg3[%283] : memref<36xf32, #tpu.memory_space<smem>>
    %285 = vector.broadcast %284 : f32 to vector<16x16xf32>
    %286 = arith.mulf %268, %285 : vector<16x16xf32>
    %287 = arith.addf %280, %286 : vector<16x16xf32>
    %c9_i32_107 = arith.constant 9 : i32
    %288 = arith.muli %266, %c9_i32_107 : i32
    %c2_i32_108 = arith.constant 2 : i32
    %289 = arith.addi %288, %c2_i32_108 : i32
    %290 = arith.index_cast %289 : i32 to index
    %291 = memref.load %arg3[%290] : memref<36xf32, #tpu.memory_space<smem>>
    %292 = vector.broadcast %291 : f32 to vector<16x16xf32>
    %293 = arith.mulf %274, %292 : vector<16x16xf32>
    %294 = arith.addf %287, %293 : vector<16x16xf32>
    %c9_i32_109 = arith.constant 9 : i32
    %295 = arith.muli %266, %c9_i32_109 : i32
    %c3_i32_110 = arith.constant 3 : i32
    %296 = arith.addi %295, %c3_i32_110 : i32
    %297 = arith.index_cast %296 : i32 to index
    %298 = memref.load %arg3[%297] : memref<36xf32, #tpu.memory_space<smem>>
    %299 = vector.broadcast %298 : f32 to vector<16x16xf32>
    %300 = arith.mulf %271, %299 : vector<16x16xf32>
    %c9_i32_111 = arith.constant 9 : i32
    %301 = arith.muli %266, %c9_i32_111 : i32
    %c4_i32_112 = arith.constant 4 : i32
    %302 = arith.addi %301, %c4_i32_112 : i32
    %303 = arith.index_cast %302 : i32 to index
    %304 = memref.load %arg3[%303] : memref<36xf32, #tpu.memory_space<smem>>
    %305 = vector.broadcast %304 : f32 to vector<16x16xf32>
    %306 = arith.mulf %268, %305 : vector<16x16xf32>
    %307 = arith.addf %300, %306 : vector<16x16xf32>
    %c9_i32_113 = arith.constant 9 : i32
    %308 = arith.muli %266, %c9_i32_113 : i32
    %c5_i32_114 = arith.constant 5 : i32
    %309 = arith.addi %308, %c5_i32_114 : i32
    %310 = arith.index_cast %309 : i32 to index
    %311 = memref.load %arg3[%310] : memref<36xf32, #tpu.memory_space<smem>>
    %312 = vector.broadcast %311 : f32 to vector<16x16xf32>
    %313 = arith.mulf %274, %312 : vector<16x16xf32>
    %314 = arith.addf %307, %313 : vector<16x16xf32>
    %c9_i32_115 = arith.constant 9 : i32
    %315 = arith.muli %266, %c9_i32_115 : i32
    %c6_i32_116 = arith.constant 6 : i32
    %316 = arith.addi %315, %c6_i32_116 : i32
    %317 = arith.index_cast %316 : i32 to index
    %318 = memref.load %arg3[%317] : memref<36xf32, #tpu.memory_space<smem>>
    %319 = vector.broadcast %318 : f32 to vector<16x16xf32>
    %320 = arith.mulf %271, %319 : vector<16x16xf32>
    %c9_i32_117 = arith.constant 9 : i32
    %321 = arith.muli %266, %c9_i32_117 : i32
    %c7_i32_118 = arith.constant 7 : i32
    %322 = arith.addi %321, %c7_i32_118 : i32
    %323 = arith.index_cast %322 : i32 to index
    %324 = memref.load %arg3[%323] : memref<36xf32, #tpu.memory_space<smem>>
    %325 = vector.broadcast %324 : f32 to vector<16x16xf32>
    %326 = arith.mulf %268, %325 : vector<16x16xf32>
    %327 = arith.addf %320, %326 : vector<16x16xf32>
    %c9_i32_119 = arith.constant 9 : i32
    %328 = arith.muli %266, %c9_i32_119 : i32
    %c8_i32_120 = arith.constant 8 : i32
    %329 = arith.addi %328, %c8_i32_120 : i32
    %330 = arith.index_cast %329 : i32 to index
    %331 = memref.load %arg3[%330] : memref<36xf32, #tpu.memory_space<smem>>
    %332 = vector.broadcast %331 : f32 to vector<16x16xf32>
    %333 = arith.mulf %274, %332 : vector<16x16xf32>
    %334 = arith.addf %327, %333 : vector<16x16xf32>
    %335 = arith.index_cast %266 : i32 to index
    %336 = memref.load %arg4[%335] : memref<4xf32, #tpu.memory_space<smem>>
    %337 = vector.broadcast %336 : f32 to vector<16x16xf32>
    %338 = arith.addf %337, %314 : vector<16x16xf32>
    %c1_i32_121 = arith.constant 1 : i32
    %339 = tpu.dynamic_rotate %294 by %c1_i32_121 dim 0 : vector<16x16xf32>, i32 -> vector<16x16xf32>
    %cst_122 = arith.constant 0.000000e+00 : f32
    %340 = vector.broadcast %cst_122 : f32 to vector<16x16xf32>
    %341 = arith.select %8, %339, %340 : vector<16x16xi1>, vector<16x16xf32>
    %342 = arith.addf %338, %341 : vector<16x16xf32>
    %c15_i32_123 = arith.constant 15 : i32
    %343 = tpu.dynamic_rotate %334 by %c15_i32_123 dim 0 : vector<16x16xf32>, i32 -> vector<16x16xf32>
    %cst_124 = arith.constant 0.000000e+00 : f32
    %344 = vector.broadcast %cst_124 : f32 to vector<16x16xf32>
    %345 = arith.select %10, %343, %344 : vector<16x16xi1>, vector<16x16xf32>
    %346 = arith.addf %342, %345 : vector<16x16xf32>
    %347 = arith.maximumf %268, %346 : vector<16x16xf32>
    %c0_125 = arith.constant 0 : index
    %c3_126 = arith.constant 3 : index
    %c0_127 = arith.constant 0 : index
    %c0_128 = arith.constant 0 : index
    %348 = vector.load %arg5[%c0_125, %c3_126, %c0_127, %c0_128] : memref<1x4x16x16xf32, #tpu.memory_space<vmem>>, vector<1x1x16x16xf32>
    %349 = vector.shape_cast %348 : vector<1x1x16x16xf32> to vector<16x16xf32>
    %350 = vector.shape_cast %347 : vector<16x16xf32> to vector<1x1x16x16xf32>
    tpu.vector_store %arg5[%c0_125, %c3_126, %c0_127, %c0_128], %350 {strides = array<i32>} : memref<1x4x16x16xf32, #tpu.memory_space<vmem>>, vector<1x1x16x16xf32>,
    return
  }
  func.func @transform_0(%arg0: i32, %arg1: i32) -> (i32, i32, i32, i32) {
    %c0_i32 = arith.constant 0 : i32
    %c0_i32_0 = arith.constant 0 : i32
    %c0_i32_1 = arith.constant 0 : i32
    return %arg0, %arg1, %c0_i32, %c0_i32_0 : i32, i32, i32, i32
  }
  func.func @transform_1(%arg0: i32, %arg1: i32) -> i32 {
    %c0_i32 = arith.constant 0 : i32
    %c0_i32_0 = arith.constant 0 : i32
    return %c0_i32 : i32
  }
  func.func @transform_2(%arg0: i32, %arg1: i32) -> i32 {
    %c0_i32 = arith.constant 0 : i32
    %c0_i32_0 = arith.constant 0 : i32
    return %c0_i32 : i32
  }
  func.func @transform_3(%arg0: i32, %arg1: i32) -> (i32, i32, i32, i32) {
    %c0_i32 = arith.constant 0 : i32
    %c0_i32_0 = arith.constant 0 : i32
    %c0_i32_1 = arith.constant 0 : i32
    return %arg0, %arg1, %c0_i32, %c0_i32_0 : i32, i32, i32, i32
  }
}

</mosaic_0001>

<llo_original>
// kernel: tpu_custom_call.1
$region0: #{tpu_custom_call.1}
  #allocation0 [shape = 'u32[]', space=smem, size = 0x4, offset = 0x4, fixed_abs, tag = 'smem constant byte address 0x4 - core index']
  #allocation1 [shape = 'u32[144,128]{1,0:T(1,128)}', space=vmem, size = 0x12000, scoped, tag = 'internal scratch']
  %s0 = inlined_call_operand.hbm [shape: f32[2,4,16,16], index: 0, kind: input, shape index: {}]
  %s1 = inlined_call_operand.vmem [shape: f32[36], index: 1, kind: input, shape index: {}]
  %s2 = inlined_call_operand.vmem [shape: f32[4], index: 2, kind: input, shape index: {}]
  %s3 = inlined_call_operand.hbm [shape: f32[2,4,16,16], index: 3, kind: output, shape index: {}]
  %s4 = sld [smem:[#allocation0]]
  $region57: #{tpu_custom_call.1} parent=0
    _
  %s6 = ssub.s32 1, %s4
  %s7 = scalar_select 0, %s6, %s4
  $region1: #{tpu_custom_call.1} parent=0
    #allocation2 [shape = 'u8[65536]{0}', space=vmem, size = 0x10000, scoped, tag = 'input window, operand 0']
    #allocation3 [shape = 's32[2]{0}', space=sflag, size = 0x8, scoped, tag = 'scoped memory for tpu_custom_call.1']
    #allocation4 [shape = 's32[2]{0}', space=sflag, size = 0x8, scoped, tag = 'scoped memory for tpu_custom_call.1']
    #allocation5 [shape = 's32[2]{0}', space=sflag, size = 0x8, scoped, tag = 'scoped memory for tpu_custom_call.1']
    #allocation6 [shape = 'u8[512]{0}', space=smem, size = 0x200, scoped, tag = 'input window, operand 1, single buffered']
    #allocation7 [shape = 'u8[512]{0}', space=smem, size = 0x200, scoped, tag = 'input window, operand 2, single buffered']
    #allocation8 [shape = 's32[1]{0}', space=sflag, size = 0x4, scoped, tag = 'scoped memory for tpu_custom_call.1']
    #allocation9 [shape = 'u8[65536]{0}', space=vmem, size = 0x10000, scoped, tag = 'output window, operand 0']
    %8 = vsyncpa [#allocation3], 0
    %s9 = scalar_lea.sflag [#allocation3], 1
    %10 = vsyncpa %s9, 0
    %11 = vsyncpa [#allocation5], 0
    %12 = vsyncpa [#allocation8], 0
    %13 = vsyncpa [#allocation4], 0
    %s14 = scalar_lea.sflag [#allocation4], 1
    %15 = vsyncpa %s14, 0
    loop: start=0, step=1, limit=4
    $region2: #{tpu_custom_call.1} parent=1 // loop_pre_header
      _
    $region3: #{tpu_custom_call.1} parent=1 // loop_header
      %s17 = sphi 0, %s21
      %p18 = scmp.ge.s32.totalorder %s17, 4
      %s24 = sphi 0, %s36
      %s25 = sphi 0, %s32
      %s26 = sphi 0, %s24
      %s27 = sphi 0, %s25
      %s28 = sphi 0, %s26
      %s29 = sphi 0, %s27
      %s41 = sphi 0, %s43
      %s44 = sphi 0, %s41
      %s45 = sphi 0, %s44
      %s61 = sphi 0, %s45
      %s65 = sphi 0, %s65
      %s67 = sphi 0, %s65
      %s68 = sphi 0, %s67
      %s82 = sphi 0, %s68
      %s86 = sphi 0, %s86
      %s88 = sphi 0, %s86
      %s89 = sphi 0, %s88
      %s103 = sphi 0, %s89
      %s111 = sphi 0, %s113
      %s114 = sphi 0, %s111
      %s115 = sphi 0, %s114
      %s131 = sphi 0, %s115
    $region4: #{tpu_custom_call.1} parent=1 // loop_header_branch
      %20 = sbr.rel (%p18) target = $region8
    $region5: #{tpu_custom_call.1} parent=1 // loop_body
      %s22 = ssub.s32 %s17, 1
      %s23 = ssub.s32 %s17, 2
      %s30 = sadd.s32 1, %s25
      %p31 = scmp.ge.s32.totalorder %s30, 1
      %s32 = scalar_select %p31, 0, %s30
      %s33 = sadd.s32 1, %s24
      %s34 = scalar_select %p31, %s33, %s24
      %p35 = scmp.ge.s32.totalorder %s34, 2
      %s36 = scalar_select %p35, 0, %s34
      %s37 = ssub.s32 %s24, %s36
      %s38 = ssub.s32 %s25, %s32
      %s39 = sor.u32 %s37, %s38
      %p40 = scmp.eq.s32.totalorder %s39, 0
      %s42 = sadd.s32 %s41, 1
      %s43 = scalar_select %p40, %s41, %s42
      %p46 = pneg %p40
      %p47 = scmp.eq.s32.totalorder %s17, 1
      %p48 = por %p46, %p47
      %p49 = scmp.ne.s32.totalorder %s41, %s44
      %p50 = scmp.eq.s32.totalorder %s17, 0
      %p51 = por %p49, %p50
      %p52 = scmp.ne.s32.totalorder %s41, %s44
      %p53 = scmp.eq.s32.totalorder %s22, 1
      %p54 = por %p52, %p53
      %p55 = scmp.ne.s32.totalorder %s44, %s45
      %p56 = scmp.eq.s32.totalorder %s22, 0
      %p57 = por %p55, %p56
      %p58 = scmp.ne.s32.totalorder %s44, %s45
      %p59 = scmp.eq.s32.totalorder %s23, 1
      %p60 = por %p58, %p59
      %p62 = scmp.ne.s32.totalorder %s45, %s61
      %p63 = scmp.eq.s32.totalorder %s23, 0
      %p64 = por %p62, %p63
      %s66 = sadd.s32 %s65, 1
      %p69 = scmp.eq.s32.totalorder %s17, 1
      %p70 = scmp.ne.s32.totalorder %s65, %s67
      %p71 = scmp.eq.s32.totalorder %s17, 0
      %p72 = por %p70, %p71
      %p73 = scmp.ne.s32.totalorder %s65, %s67
      %p74 = scmp.eq.s32.totalorder %s22, 1
      %p75 = por %p73, %p74
      %p76 = scmp.ne.s32.totalorder %s67, %s68
      %p77 = scmp.eq.s32.totalorder %s22, 0
      %p78 = por %p76, %p77
      %p79 = scmp.ne.s32.totalorder %s67, %s68
      %p80 = scmp.eq.s32.totalorder %s23, 1
      %p81 = por %p79, %p80
      %p83 = scmp.ne.s32.totalorder %s68, %s82
      %p84 = scmp.eq.s32.totalorder %s23, 0
      %p85 = por %p83, %p84
      %s87 = sadd.s32 %s86, 1
      %p90 = scmp.eq.s32.totalorder %s17, 1
      %p91 = scmp.ne.s32.totalorder %s86, %s88
      %p92 = scmp.eq.s32.totalorder %s17, 0
      %p93 = por %p91, %p92
      %p94 = scmp.ne.s32.totalorder %s86, %s88
      %p95 = scmp.eq.s32.totalorder %s22, 1
      %p96 = por %p94, %p95
      %p97 = scmp.ne.s32.totalorder %s88, %s89
      %p98 = scmp.eq.s32.totalorder %s22, 0
      %p99 = por %p97, %p98
      %p100 = scmp.ne.s32.totalorder %s88, %s89
      %p101 = scmp.eq.s32.totalorder %s23, 1
      %p102 = por %p100, %p101
      %p104 = scmp.ne.s32.totalorder %s89, %s103
      %p105 = scmp.eq.s32.totalorder %s23, 0
      %p106 = por %p104, %p105
      %s107 = ssub.s32 %s24, %s36
      %s108 = ssub.s32 %s25, %s32
      %s109 = sor.u32 %s107, %s108
      %p110 = scmp.eq.s32.totalorder %s109, 0
      %s112 = sadd.s32 %s111, 1
      %s113 = scalar_select %p110, %s111, %s112
      %p116 = pneg %p110
      %p117 = scmp.eq.s32.totalorder %s17, 1
      %p118 = por %p116, %p117
      %p119 = scmp.ne.s32.totalorder %s111, %s114
      %p120 = scmp.eq.s32.totalorder %s17, 0
      %p121 = por %p119, %p120
      %p122 = scmp.ne.s32.totalorder %s111, %s114
      %p123 = scmp.eq.s32.totalorder %s22, 1
      %p124 = por %p122, %p123
      %p125 = scmp.ne.s32.totalorder %s114, %s115
      %p126 = scmp.eq.s32.totalorder %s22, 0
      %p127 = por %p125, %p126
      %p128 = scmp.ne.s32.totalorder %s114, %s115
      %p129 = scmp.eq.s32.totalorder %s23, 1
      %p130 = por %p128, %p129
      %p132 = scmp.ne.s32.totalorder %s115, %s131
      %p133 = scmp.eq.s32.totalorder %s23, 0
      %p134 = por %p132, %p133
      %p135 = scmp.le.s32.totalorder 1, %s17
      %p136 = scmp.lt.s32.totalorder %s17, 3
      %p137 = pnand %p135, %p136
      %p138 = pneg %p137
      // Predicated region
      $region9: #{tpu_custom_call.1} parent=5 // pred_check
        _
      $region10: #{tpu_custom_call.1} parent=5 // pred_check_branch
        %140 = sbr.rel (%p137) target = $region12
      $region11: #{tpu_custom_call.1} parent=5 // pred_region
        %s141 = ssub.s32 %s17, 1
        // Predicated region
        $region13: #{tpu_custom_call.1} parent=11 // pred_check
          %p142 = pneg %p78
        $region14: #{tpu_custom_call.1} parent=11 // pred_check_branch
          %144 = sbr.rel (%p142) target = $region16
        $region15: #{tpu_custom_call.1} parent=11 // pred_region
          %s146 = ssub.s32 16, 16
          %147 = vsyncadd [#allocation5], %s146
          %s149 = sshll.u32 %s1, 4
          %s150 = int_to_ptr.vmem [resolvable:$true] %s149
          %152 = dma.vmem_to_smem %s150, 16, [#allocation6], [#allocation5]
        $region16: #{tpu_custom_call.1} parent=11 // pred_fallthru
          _
        // Predicated region
        $region17: #{tpu_custom_call.1} parent=11 // pred_check
          %p153 = pneg %p99
        $region18: #{tpu_custom_call.1} parent=11 // pred_check_branch
          %155 = sbr.rel (%p153) target = $region20
        $region19: #{tpu_custom_call.1} parent=11 // pred_region
          %s157 = ssub.s32 16, 16
          %158 = vsyncadd [#allocation8], %s157
          %s160 = sshll.u32 %s2, 4
          %s161 = int_to_ptr.vmem [resolvable:$true] %s160
          %163 = dma.vmem_to_smem %s161, 16, [#allocation7], [#allocation8]
        $region20: #{tpu_custom_call.1} parent=11 // pred_fallthru
          _
      $region12: #{tpu_custom_call.1} parent=5 // pred_fallthru
        _
      %p164 = scmp.lt.s32.totalorder %s17, 2
      // Predicated region
      $region21: #{tpu_custom_call.1} parent=5 // pred_check
        %p165 = pneg %p164
      $region22: #{tpu_custom_call.1} parent=5 // pred_check_branch
        %167 = sbr.rel (%p165) target = $region24
      $region23: #{tpu_custom_call.1} parent=5 // pred_region
        // Predicated region
        $region25: #{tpu_custom_call.1} parent=23 // pred_check
          %p168 = pneg %p51
        $region26: #{tpu_custom_call.1} parent=23 // pred_check_branch
          %170 = sbr.rel (%p168) target = $region28
        $region27: #{tpu_custom_call.1} parent=23 // pred_region
          %s171 = sand.u32 %s41, 1
          %s172 = scalar_lea.sflag [#allocation3], %s171
          %s173 = sand.u32 %s41, 1
          %s174 = smul.addr %s173, 64
          %s175 = scalar_lea.vmem [#allocation2], %s174
          %s176 = smul.u32 4, %s25
          %s178 = ssub.s32 1024, 1024
          %179 = vsyncadd %s172, %s178
          %s180 = smul.addr %s176, 2
          %s181 = smul.addr %s24, 8
          %s182 = sadd.s32 %s180, %s181
          %s183 = smul.addr %s182, 128
          %s184 = scalar_lea.hbm %s0, %s183
          %s185 = sshll.u32 %s175, 4
          %s186 = int_to_ptr.vmem [resolvable:$true] %s185
          %191 = dma.hbm_to_vmem [thread:$0]  %s184, 1024, %s186, %s172, 128, 128, 8
        $region28: #{tpu_custom_call.1} parent=23 // pred_fallthru
          _
      $region24: #{tpu_custom_call.1} parent=5 // pred_fallthru
        _
      %p192 = scmp.le.s32.totalorder 1, %s17
      %p193 = scmp.lt.s32.totalorder %s17, 3
      %p194 = pnand %p192, %p193
      %p195 = pneg %p194
      // Predicated region
      $region29: #{tpu_custom_call.1} parent=5 // pred_check
        _
      $region30: #{tpu_custom_call.1} parent=5 // pred_check_branch
        %197 = sbr.rel (%p194) target = $region32
      $region31: #{tpu_custom_call.1} parent=5 // pred_region
        %s198 = ssub.s32 %s17, 1
        %s199 = sand.u32 %s44, 1
        %s200 = scalar_lea.sflag [#allocation3], %s199
        %s201 = sand.u32 %s44, 1
        %s202 = smul.addr %s201, 64
        %s203 = scalar_lea.vmem [#allocation2], %s202
        // Predicated region
        $region33: #{tpu_custom_call.1} parent=31 // pred_check
          %p204 = pneg %p57
        $region34: #{tpu_custom_call.1} parent=31 // pred_check_branch
          %206 = sbr.rel (%p204) target = $region36
        $region35: #{tpu_custom_call.1} parent=31 // pred_region
          %207 = dma.done %s200, 1024
        $region36: #{tpu_custom_call.1} parent=31 // pred_fallthru
          _
        // Predicated region
        $region37: #{tpu_custom_call.1} parent=31 // pred_check
          %p208 = pneg %p78
        $region38: #{tpu_custom_call.1} parent=31 // pred_check_branch
          %210 = sbr.rel (%p208) target = $region40
        $region39: #{tpu_custom_call.1} parent=31 // pred_region
          %211 = dma.done [#allocation5], 16
        $region40: #{tpu_custom_call.1} parent=31 // pred_fallthru
          _
        // Predicated region
        $region41: #{tpu_custom_call.1} parent=31 // pred_check
          %p212 = pneg %p99
        $region42: #{tpu_custom_call.1} parent=31 // pred_check_branch
          %214 = sbr.rel (%p212) target = $region44
        $region43: #{tpu_custom_call.1} parent=31 // pred_region
          %215 = dma.done [#allocation8], 16
        $region44: #{tpu_custom_call.1} parent=31 // pred_fallthru
          _
        %216 = sfence
        %s217 = sand.u32 %s44, 1
        %s218 = scalar_lea.sflag [#allocation3], %s217
        %s219 = sand.u32 %s44, 1
        %s220 = smul.addr %s219, 64
        %s221 = scalar_lea.vmem [#allocation2], %s220
        %p222 = pneg %p57
        %p223 = pneg %p54
        %p224 = pneg %p78
        %p225 = pneg %p75
        %p226 = pneg %p99
        %p227 = pneg %p96
        %p228 = pneg %p127
        %p229 = pneg %p124
        %s230 = sand.u32 %s114, 1
        %s231 = scalar_lea.sflag [#allocation4], %s230
        %s232 = sand.u32 %s114, 1
        %s233 = smul.addr %s232, 64
        %s234 = scalar_lea.vmem [#allocation9], %s233
        %s235 = smul.u32 4, %s27
        %s236 = smul.u32 4, %s27
        %s237 = smul.u32 %s27, 4
        %v238 = vlaneseq
        %v239 = vshrl.u32 %v238, 7
        %v240 = vadd.s32 %v239, 8
        %v241 = vlaneseq
        %v242 = vand.u32 %v241, 127
        %vm243 = vcmp.gt.s32.totalorder %v242, 0
        %vm244 = vcmp.lt.s32.totalorder %v242, 15
        %vm245 = vcmp.gt.s32.totalorder %v239, 0
        %vm246 = vcmp.gt.s32.totalorder %v240, 0
        %vm247 = vcmp.lt.s32.totalorder %v239, 15
        %vm248 = vcmp.lt.s32.totalorder %v240, 15
        %v249 = vld [vmem:[%s203] sm:$0xff]
        %v250 = vld [vmem:[%s203 + $0x8] sm:$0xff]
        %vm251 = vcmask 1047680
        %252 = vrot.lane.b32.xlu0 %v249, 16
        %v253 = vpop.permute.xlu0 %252
        %v254 = vsel %vm251, %v253, %v249
        %255 = vrot.lane.b32.xlu0 %v250, 16
        %v256 = vpop.permute.xlu0 %255
        %v257 = vsel %vm251, %v256, %v250
        %258 = vrot.lane.b32.xlu0 %v254, 16
        %v259 = vpop.permute.xlu0 %258
        %260 = vrot.lane.b32.xlu0 %v257, 16
        %v261 = vpop.permute.xlu0 %260
        %v262 = vsel %vm251, %v259, %v249
        %v263 = vsel %vm251, %v261, %v250
        %266 = vrot.lane.b32.xlu0 %v262, 113
        %v267 = vpop.permute.xlu0 %266
        %268 = vrot.lane.b32.xlu0 %v263, 113
        %v269 = vpop.permute.xlu0 %268
        %v272 = vsel %vm243, %v267, 0.0
        %v273 = vsel %vm243, %v269, 0.0
        %274 = vrot.lane.b32.xlu0 %v262, 127
        %v275 = vpop.permute.xlu0 %274
        %276 = vrot.lane.b32.xlu0 %v263, 127
        %v277 = vpop.permute.xlu0 %276
        %v280 = vsel %vm244, %v275, 0.0
        %v281 = vsel %vm244, %v277, 0.0
        %s282 = smul.u32 %s27, 36
        %s283 = sld [smem:[#allocation6 + %s282]]
        %v284 = vstv %s283
        %v285 = vmul.f32 %v272, %v284
        %v286 = vmul.f32 %v273, %v284
        %s287 = sadd.s32 %s282, 1
        %s288 = sld [smem:[#allocation6 + %s287]]
        %v289 = vstv %s288
        %v290 = vmul.f32 %v249, %v289
        %v291 = vmul.f32 %v250, %v289
        %v292 = vadd.f32 %v285, %v290
        %v293 = vadd.f32 %v286, %v291
        %s294 = sadd.s32 %s282, 2
        %s295 = sld [smem:[#allocation6 + %s294]]
        %v296 = vstv %s295
        %v297 = vmul.f32 %v280, %v296
        %v298 = vmul.f32 %v281, %v296
        %v299 = vadd.f32 %v292, %v297
        %v300 = vadd.f32 %v293, %v298
        %s301 = sadd.s32 %s282, 3
        %s302 = sld [smem:[#allocation6 + %s301]]
        %v303 = vstv %s302
        %v304 = vmul.f32 %v272, %v303
        %v305 = vmul.f32 %v273, %v303
        %s306 = sadd.s32 %s282, 4
        %s307 = sld [smem:[#allocation6 + %s306]]
        %v308 = vstv %s307
        %v309 = vmul.f32 %v249, %v308
        %v310 = vmul.f32 %v250, %v308
        %v311 = vadd.f32 %v304, %v309
        %v312 = vadd.f32 %v305, %v310
        %s313 = sadd.s32 %s282, 5
        %s314 = sld [smem:[#allocation6 + %s313]]
        %v315 = vstv %s314
        %v316 = vmul.f32 %v280, %v315
        %v317 = vmul.f32 %v281, %v315
        %v318 = vadd.f32 %v311, %v316
        %v319 = vadd.f32 %v312, %v317
        %s320 = sadd.s32 %s282, 6
        %s321 = sld [smem:[#allocation6 + %s320]]
        %v322 = vstv %s321
        %v323 = vmul.f32 %v272, %v322
        %v324 = vmul.f32 %v273, %v322
        %s325 = sadd.s32 %s282, 7
        %s326 = sld [smem:[#allocation6 + %s325]]
        %v327 = vstv %s326
        %v328 = vmul.f32 %v249, %v327
        %v329 = vmul.f32 %v250, %v327
        %v330 = vadd.f32 %v323, %v328
        %v331 = vadd.f32 %v324, %v329
        %s332 = sadd.s32 %s282, 8
        %s333 = sld [smem:[#allocation6 + %s332]]
        %v334 = vstv %s333
        %v335 = vmul.f32 %v280, %v334
        %v336 = vmul.f32 %v281, %v334
        %v337 = vadd.f32 %v330, %v335
        %v338 = vadd.f32 %v331, %v336
        %s339 = sld [smem:[#allocation7 + %s237]]
        %v340 = vstv %s339
        %v341 = vadd.f32 %v340, %v318
        %v342 = vadd.f32 %v340, %v319
        %v343 = vrot.slane %v299, 7
        %v344 = vrot.slane %v300, 7
        %vm345 = vcmp.lt.s32.totalorder %v239, 1
        %v346 = vsel %vm345, %v343, %v344
        %v347 = vsel %vm345, %v344, %v343
        %v348 = vsel %vm245, %v347, 0.0
        %v349 = vsel %vm246, %v346, 0.0
        %v350 = vadd.f32 %v341, %v348
        %v351 = vadd.f32 %v342, %v349
        %v352 = vrot.slane %v337, 1
        %v353 = vrot.slane %v338, 1
        %vm354 = vcmp.lt.s32.totalorder %v239, 7
        %v355 = vsel %vm354, %v352, %v353
        %v356 = vsel %vm354, %v353, %v352
        %v357 = vsel %vm247, %v355, 0.0
        %v358 = vsel %vm248, %v356, 0.0
        %v359 = vadd.f32 %v350, %v357
        %v360 = vadd.f32 %v351, %v358
        %v361 = vmax.f32 %v249, %v359
        %v362 = vmax.f32 %v250, %v360
        %vm363 = vcmask 130048
        %364 = vst.msk [vmem:[%s234] sm:$0xff] %vm363, %v361
        %365 = vst.msk [vmem:[%s234 + $0x8] sm:$0xff] %vm363, %v362
        %s366 = sadd.s32 %s237, 1
        %s367 = scalar_lea.vmem %s203, 16 [#allocation2]
        %v368 = vld [vmem:[%s367] sm:$0xff]
        %v369 = vld [vmem:[%s367 + $0x8] sm:$0xff]
        %370 = vrot.lane.b32.xlu0 %v368, 16
        %v371 = vpop.permute.xlu0 %370
        %v372 = vsel %vm251, %v371, %v368
        %373 = vrot.lane.b32.xlu0 %v369, 16
        %v374 = vpop.permute.xlu0 %373
        %v375 = vsel %vm251, %v374, %v369
        %376 = vrot.lane.b32.xlu0 %v372, 16
        %v377 = vpop.permute.xlu0 %376
        %378 = vrot.lane.b32.xlu0 %v375, 16
        %v379 = vpop.permute.xlu0 %378
        %v380 = vsel %vm251, %v377, %v368
        %v381 = vsel %vm251, %v379, %v369
        %384 = vrot.lane.b32.xlu0 %v380, 113
        %v385 = vpop.permute.xlu0 %384
        %386 = vrot.lane.b32.xlu0 %v381, 113
        %v387 = vpop.permute.xlu0 %386
        %v390 = vsel %vm243, %v385, 0.0
        %v391 = vsel %vm243, %v387, 0.0
        %392 = vrot.lane.b32.xlu0 %v380, 127
        %v393 = vpop.permute.xlu0 %392
        %394 = vrot.lane.b32.xlu0 %v381, 127
        %v395 = vpop.permute.xlu0 %394
        %v398 = vsel %vm244, %v393, 0.0
        %v399 = vsel %vm244, %v395, 0.0
        %s400 = smul.u32 %s366, 9
        %s401 = sld [smem:[#allocation6 + %s400]]
        %v402 = vstv %s401
        %v403 = vmul.f32 %v390, %v402
        %v404 = vmul.f32 %v391, %v402
        %s405 = sadd.s32 %s400, 1
        %s406 = sld [smem:[#allocation6 + %s405]]
        %v407 = vstv %s406
        %v408 = vmul.f32 %v368, %v407
        %v409 = vmul.f32 %v369, %v407
        %v410 = vadd.f32 %v403, %v408
        %v411 = vadd.f32 %v404, %v409
        %s412 = sadd.s32 %s400, 2
        %s413 = sld [smem:[#allocation6 + %s412]]
        %v414 = vstv %s413
        %v415 = vmul.f32 %v398, %v414
        %v416 = vmul.f32 %v399, %v414
        %v417 = vadd.f32 %v410, %v415
        %v418 = vadd.f32 %v411, %v416
        %s419 = sadd.s32 %s400, 3
        %s420 = sld [smem:[#allocation6 + %s419]]
        %v421 = vstv %s420
        %v422 = vmul.f32 %v390, %v421
        %v423 = vmul.f32 %v391, %v421
        %s424 = sadd.s32 %s400, 4
        %s425 = sld [smem:[#allocation6 + %s424]]
        %v426 = vstv %s425
        %v427 = vmul.f32 %v368, %v426
        %v428 = vmul.f32 %v369, %v426
        %v429 = vadd.f32 %v422, %v427
        %v430 = vadd.f32 %v423, %v428
        %s431 = sadd.s32 %s400, 5
        %s432 = sld [smem:[#allocation6 + %s431]]
        %v433 = vstv %s432
        %v434 = vmul.f32 %v398, %v433
        %v435 = vmul.f32 %v399, %v433
        %v436 = vadd.f32 %v429, %v434
        %v437 = vadd.f32 %v430, %v435
        %s438 = sadd.s32 %s400, 6
        %s439 = sld [smem:[#allocation6 + %s438]]
        %v440 = vstv %s439
        %v441 = vmul.f32 %v390, %v440
        %v442 = vmul.f32 %v391, %v440
        %s443 = sadd.s32 %s400, 7
        %s444 = sld [smem:[#allocation6 + %s443]]
        %v445 = vstv %s444
        %v446 = vmul.f32 %v368, %v445
        %v447 = vmul.f32 %v369, %v445
        %v448 = vadd.f32 %v441, %v446
        %v449 = vadd.f32 %v442, %v447
        %s450 = sadd.s32 %s400, 8
        %s451 = sld [smem:[#allocation6 + %s450]]
        %v452 = vstv %s451
        %v453 = vmul.f32 %v398, %v452
        %v454 = vmul.f32 %v399, %v452
        %v455 = vadd.f32 %v448, %v453
        %v456 = vadd.f32 %v449, %v454
        %s457 = sld [smem:[#allocation7 + %s366]]
        %v458 = vstv %s457
        %v459 = vadd.f32 %v458, %v436
        %v460 = vadd.f32 %v458, %v437
        %v461 = vrot.slane %v417, 7
        %v462 = vrot.slane %v418, 7
        %v463 = vsel %vm345, %v461, %v462
        %v464 = vsel %vm345, %v462, %v461
        %v465 = vsel %vm245, %v464, 0.0
        %v466 = vsel %vm246, %v463, 0.0
        %v467 = vadd.f32 %v459, %v465
        %v468 = vadd.f32 %v460, %v466
        %v469 = vrot.slane %v455, 1
        %v470 = vrot.slane %v456, 1
        %v471 = vsel %vm354, %v469, %v470
        %v472 = vsel %vm354, %v470, %v469
        %v473 = vsel %vm247, %v471, 0.0
        %v474 = vsel %vm248, %v472, 0.0
        %v475 = vadd.f32 %v467, %v473
        %v476 = vadd.f32 %v468, %v474
        %v477 = vmax.f32 %v368, %v475
        %v478 = vmax.f32 %v369, %v476
        %s479 = scalar_lea.vmem %s234, 16 [#allocation9]
        %480 = vst.msk [vmem:[%s479] sm:$0xff] %vm363, %v477
        %481 = vst.msk [vmem:[%s479 + $0x8] sm:$0xff] %vm363, %v478
        %s482 = sadd.s32 %s237, 2
        %s483 = scalar_lea.vmem %s203, 32 [#allocation2]
        %v484 = vld [vmem:[%s483] sm:$0xff]
        %v485 = vld [vmem:[%s483 + $0x8] sm:$0xff]
        %486 = vrot.lane.b32.xlu0 %v484, 16
        %v487 = vpop.permute.xlu0 %486
        %v488 = vsel %vm251, %v487, %v484
        %489 = vrot.lane.b32.xlu0 %v485, 16
        %v490 = vpop.permute.xlu0 %489
        %v491 = vsel %vm251, %v490, %v485
        %492 = vrot.lane.b32.xlu0 %v488, 16
        %v493 = vpop.permute.xlu0 %492
        %494 = vrot.lane.b32.xlu0 %v491, 16
        %v495 = vpop.permute.xlu0 %494
        %v496 = vsel %vm251, %v493, %v484
        %v497 = vsel %vm251, %v495, %v485
        %500 = vrot.lane.b32.xlu0 %v496, 113
        %v501 = vpop.permute.xlu0 %500
        %502 = vrot.lane.b32.xlu0 %v497, 113
        %v503 = vpop.permute.xlu0 %502
        %v506 = vsel %vm243, %v501, 0.0
        %v507 = vsel %vm243, %v503, 0.0
        %508 = vrot.lane.b32.xlu0 %v496, 127
        %v509 = vpop.permute.xlu0 %508
        %510 = vrot.lane.b32.xlu0 %v497, 127
        %v511 = vpop.permute.xlu0 %510
        %v514 = vsel %vm244, %v509, 0.0
        %v515 = vsel %vm244, %v511, 0.0
        %s516 = smul.u32 %s482, 9
        %s517 = sld [smem:[#allocation6 + %s516]]
        %v518 = vstv %s517
        %v519 = vmul.f32 %v506, %v518
        %v520 = vmul.f32 %v507, %v518
        %s521 = sadd.s32 %s516, 1
        %s522 = sld [smem:[#allocation6 + %s521]]
        %v523 = vstv %s522
        %v524 = vmul.f32 %v484, %v523
        %v525 = vmul.f32 %v485, %v523
        %v526 = vadd.f32 %v519, %v524
        %v527 = vadd.f32 %v520, %v525
        %s528 = sadd.s32 %s516, 2
        %s529 = sld [smem:[#allocation6 + %s528]]
        %v530 = vstv %s529
        %v531 = vmul.f32 %v514, %v530
        %v532 = vmul.f32 %v515, %v530
        %v533 = vadd.f32 %v526, %v531
        %v534 = vadd.f32 %v527, %v532
        %s535 = sadd.s32 %s516, 3
        %s536 = sld [smem:[#allocation6 + %s535]]
        %v537 = vstv %s536
        %v538 = vmul.f32 %v506, %v537
        %v539 = vmul.f32 %v507, %v537
        %s540 = sadd.s32 %s516, 4
        %s541 = sld [smem:[#allocation6 + %s540]]
        %v542 = vstv %s541
        %v543 = vmul.f32 %v484, %v542
        %v544 = vmul.f32 %v485, %v542
        %v545 = vadd.f32 %v538, %v543
        %v546 = vadd.f32 %v539, %v544
        %s547 = sadd.s32 %s516, 5
        %s548 = sld [smem:[#allocation6 + %s547]]
        %v549 = vstv %s548
        %v550 = vmul.f32 %v514, %v549
        %v551 = vmul.f32 %v515, %v549
        %v552 = vadd.f32 %v545, %v550
        %v553 = vadd.f32 %v546, %v551
        %s554 = sadd.s32 %s516, 6
        %s555 = sld [smem:[#allocation6 + %s554]]
        %v556 = vstv %s555
        %v557 = vmul.f32 %v506, %v556
        %v558 = vmul.f32 %v507, %v556
        %s559 = sadd.s32 %s516, 7
        %s560 = sld [smem:[#allocation6 + %s559]]
        %v561 = vstv %s560
        %v562 = vmul.f32 %v484, %v561
        %v563 = vmul.f32 %v485, %v561
        %v564 = vadd.f32 %v557, %v562
        %v565 = vadd.f32 %v558, %v563
        %s566 = sadd.s32 %s516, 8
        %s567 = sld [smem:[#allocation6 + %s566]]
        %v568 = vstv %s567
        %v569 = vmul.f32 %v514, %v568
        %v570 = vmul.f32 %v515, %v568
        %v571 = vadd.f32 %v564, %v569
        %v572 = vadd.f32 %v565, %v570
        %s573 = sld [smem:[#allocation7 + %s482]]
        %v574 = vstv %s573
        %v575 = vadd.f32 %v574, %v552
        %v576 = vadd.f32 %v574, %v553
        %v577 = vrot.slane %v533, 7
        %v578 = vrot.slane %v534, 7
        %v579 = vsel %vm345, %v577, %v578
        %v580 = vsel %vm345, %v578, %v577
        %v581 = vsel %vm245, %v580, 0.0
        %v582 = vsel %vm246, %v579, 0.0
        %v583 = vadd.f32 %v575, %v581
        %v584 = vadd.f32 %v576, %v582
        %v585 = vrot.slane %v571, 1
        %v586 = vrot.slane %v572, 1
        %v587 = vsel %vm354, %v585, %v586
        %v588 = vsel %vm354, %v586, %v585
        %v589 = vsel %vm247, %v587, 0.0
        %v590 = vsel %vm248, %v588, 0.0
        %v591 = vadd.f32 %v583, %v589
        %v592 = vadd.f32 %v584, %v590
        %v593 = vmax.f32 %v484, %v591
        %v594 = vmax.f32 %v485, %v592
        %s595 = scalar_lea.vmem %s234, 32 [#allocation9]
        %596 = vst.msk [vmem:[%s595] sm:$0xff] %vm363, %v593
        %597 = vst.msk [vmem:[%s595 + $0x8] sm:$0xff] %vm363, %v594
        %s598 = sadd.s32 %s237, 3
        %s599 = scalar_lea.vmem %s203, 48 [#allocation2]
        %v600 = vld [vmem:[%s599] sm:$0xff]
        %v601 = vld [vmem:[%s599 + $0x8] sm:$0xff]
        %602 = vrot.lane.b32.xlu0 %v600, 16
        %v603 = vpop.permute.xlu0 %602
        %v604 = vsel %vm251, %v603, %v600
        %605 = vrot.lane.b32.xlu0 %v601, 16
        %v606 = vpop.permute.xlu0 %605
        %v607 = vsel %vm251, %v606, %v601
        %608 = vrot.lane.b32.xlu0 %v604, 16
        %v609 = vpop.permute.xlu0 %608
        %610 = vrot.lane.b32.xlu0 %v607, 16
        %v611 = vpop.permute.xlu0 %610
        %v612 = vsel %vm251, %v609, %v600
        %v613 = vsel %vm251, %v611, %v601
        %616 = vrot.lane.b32.xlu0 %v612, 113
        %v617 = vpop.permute.xlu0 %616
        %618 = vrot.lane.b32.xlu0 %v613, 113
        %v619 = vpop.permute.xlu0 %618
        %v622 = vsel %vm243, %v617, 0.0
        %v623 = vsel %vm243, %v619, 0.0
        %624 = vrot.lane.b32.xlu0 %v612, 127
        %v625 = vpop.permute.xlu0 %624
        %626 = vrot.lane.b32.xlu0 %v613, 127
        %v627 = vpop.permute.xlu0 %626
        %v630 = vsel %vm244, %v625, 0.0
        %v631 = vsel %vm244, %v627, 0.0
        %s632 = smul.u32 %s598, 9
        %s633 = sld [smem:[#allocation6 + %s632]]
        %v634 = vstv %s633
        %v635 = vmul.f32 %v622, %v634
        %v636 = vmul.f32 %v623, %v634
        %s637 = sadd.s32 %s632, 1
        %s638 = sld [smem:[#allocation6 + %s637]]
        %v639 = vstv %s638
        %v640 = vmul.f32 %v600, %v639
        %v641 = vmul.f32 %v601, %v639
        %v642 = vadd.f32 %v635, %v640
        %v643 = vadd.f32 %v636, %v641
        %s644 = sadd.s32 %s632, 2
        %s645 = sld [smem:[#allocation6 + %s644]]
        %v646 = vstv %s645
        %v647 = vmul.f32 %v630, %v646
        %v648 = vmul.f32 %v631, %v646
        %v649 = vadd.f32 %v642, %v647
        %v650 = vadd.f32 %v643, %v648
        %s651 = sadd.s32 %s632, 3
        %s652 = sld [smem:[#allocation6 + %s651]]
        %v653 = vstv %s652
        %v654 = vmul.f32 %v622, %v653
        %v655 = vmul.f32 %v623, %v653
        %s656 = sadd.s32 %s632, 4
        %s657 = sld [smem:[#allocation6 + %s656]]
        %v658 = vstv %s657
        %v659 = vmul.f32 %v600, %v658
        %v660 = vmul.f32 %v601, %v658
        %v661 = vadd.f32 %v654, %v659
        %v662 = vadd.f32 %v655, %v660
        %s663 = sadd.s32 %s632, 5
        %s664 = sld [smem:[#allocation6 + %s663]]
        %v665 = vstv %s664
        %v666 = vmul.f32 %v630, %v665
        %v667 = vmul.f32 %v631, %v665
        %v668 = vadd.f32 %v661, %v666
        %v669 = vadd.f32 %v662, %v667
        %s670 = sadd.s32 %s632, 6
        %s671 = sld [smem:[#allocation6 + %s670]]
        %v672 = vstv %s671
        %v673 = vmul.f32 %v622, %v672
        %v674 = vmul.f32 %v623, %v672
        %s675 = sadd.s32 %s632, 7
        %s676 = sld [smem:[#allocation6 + %s675]]
        %v677 = vstv %s676
        %v678 = vmul.f32 %v600, %v677
        %v679 = vmul.f32 %v601, %v677
        %v680 = vadd.f32 %v673, %v678
        %v681 = vadd.f32 %v674, %v679
        %s682 = sadd.s32 %s632, 8
        %s683 = sld [smem:[#allocation6 + %s682]]
        %v684 = vstv %s683
        %v685 = vmul.f32 %v630, %v684
        %v686 = vmul.f32 %v631, %v684
        %v687 = vadd.f32 %v680, %v685
        %v688 = vadd.f32 %v681, %v686
        %s689 = sld [smem:[#allocation7 + %s598]]
        %v690 = vstv %s689
        %v691 = vadd.f32 %v690, %v668
        %v692 = vadd.f32 %v690, %v669
        %v693 = vrot.slane %v649, 7
        %v694 = vrot.slane %v650, 7
        %v695 = vsel %vm345, %v693, %v694
        %v696 = vsel %vm345, %v694, %v693
        %v697 = vsel %vm245, %v696, 0.0
        %v698 = vsel %vm246, %v695, 0.0
        %v699 = vadd.f32 %v691, %v697
        %v700 = vadd.f32 %v692, %v698
        %v701 = vrot.slane %v687, 1
        %v702 = vrot.slane %v688, 1
        %v703 = vsel %vm354, %v701, %v702
        %v704 = vsel %vm354, %v702, %v701
        %v705 = vsel %vm247, %v703, 0.0
        %v706 = vsel %vm248, %v704, 0.0
        %v707 = vadd.f32 %v699, %v705
        %v708 = vadd.f32 %v700, %v706
        %v709 = vmax.f32 %v600, %v707
        %v710 = vmax.f32 %v601, %v708
        %s711 = scalar_lea.vmem %s234, 48 [#allocation9]
        %712 = vst.msk [vmem:[%s711] sm:$0xff] %vm363, %v709
        %713 = vst.msk [vmem:[%s711 + $0x8] sm:$0xff] %vm363, %v710
        %s714 = sand.u32 %s114, 1
        %s715 = scalar_lea.sflag [#allocation4], %s714
        %s716 = sand.u32 %s114, 1
        %s717 = smul.addr %s716, 64
        %s718 = scalar_lea.vmem [#allocation9], %s717
        // Predicated region
        $region45: #{tpu_custom_call.1} parent=31 // pred_check
          %p719 = pneg %p124
        $region46: #{tpu_custom_call.1} parent=31 // pred_check_branch
          %721 = sbr.rel (%p719) target = $region48
        $region47: #{tpu_custom_call.1} parent=31 // pred_region
          %s722 = smul.u32 4, %s27
          %s724 = ssub.s32 1024, 1024
          %725 = vsyncadd %s715, %s724
          %s726 = smul.addr %s722, 2
          %s727 = smul.addr %s26, 8
          %s728 = sadd.s32 %s726, %s727
          %s729 = smul.addr %s728, 128
          %s730 = scalar_lea.hbm %s3, %s729
          %s731 = sshll.u32 %s718, 4
          %s732 = int_to_ptr.vmem [resolvable:$true] %s731
          %737 = dma.vmem_to_hbm [thread:$0]  %s732, 1024, %s730, %s715, 128, 128, 8
        $region48: #{tpu_custom_call.1} parent=31 // pred_fallthru
          _
      $region32: #{tpu_custom_call.1} parent=5 // pred_fallthru
        _
      %p738 = scmp.le.s32.totalorder 2, %s17
      // Predicated region
      $region49: #{tpu_custom_call.1} parent=5 // pred_check
        %p739 = pneg %p738
      $region50: #{tpu_custom_call.1} parent=5 // pred_check_branch
        %741 = sbr.rel (%p739) target = $region52
      $region51: #{tpu_custom_call.1} parent=5 // pred_region
        %s742 = ssub.s32 %s17, 2
        // Predicated region
        $region53: #{tpu_custom_call.1} parent=51 // pred_check
          %p743 = pneg %p130
        $region54: #{tpu_custom_call.1} parent=51 // pred_check_branch
          %745 = sbr.rel (%p743) target = $region56
        $region55: #{tpu_custom_call.1} parent=51 // pred_region
          %s746 = sand.u32 %s115, 1
          %s747 = scalar_lea.sflag [#allocation4], %s746
          %s748 = sand.u32 %s115, 1
          %s749 = smul.addr %s748, 64
          %s750 = scalar_lea.vmem [#allocation9], %s749
          %751 = dma.done %s747, 1024
        $region56: #{tpu_custom_call.1} parent=51 // pred_fallthru
          _
      $region52: #{tpu_custom_call.1} parent=5 // pred_fallthru
        _
    $region6: #{tpu_custom_call.1} parent=1 // loop_footer
      %s21 = sadd.s32 1, %s17
    $region7: #{tpu_custom_call.1} parent=1 // loop_footer_branch
      %16 = sbr.rel target = $region3
    $region8: #{tpu_custom_call.1} parent=1 // loop_exit
      _
    %752 = vsyncpa [#allocation3], 1
    %s753 = scalar_lea.sflag [#allocation3], 1
    %754 = vsyncpa %s753, 1
    %755 = vsyncpa [#allocation4], 1
    %s756 = scalar_lea.sflag [#allocation4], 1
    %757 = vsyncpa %s756, 1
    %758 = vsyncpa [#allocation5], 1
    %s759 = scalar_lea.sflag [#allocation5], 1
    %760 = vsyncpa %s759, 1
    %761 = vsyncpa [#allocation8], 1

</llo_original>
